<compile_context>
chip_gen: v7x
topology: tpu7x:2x2x1
jax: 0.10.0
libtpu: 0.0.40
codegen_flags: <defaults>
</compile_context>

<pallas_src>
import jax
import jax.numpy as jnp
from jax import lax
from jax.experimental import pallas as pl
from jax.experimental.pallas import tpu as pltpu


def _minimal_kernel(param_ref, out_ref):
    # param_ref: (1,) f32 in SMEM;  out_ref: (1, 2) f32 in VMEM.
    x = param_ref[0]
    # signs = [[-1., 1.]] built in-kernel (no captured host constant).
    signs = 2.0 * lax.broadcasted_iota(jnp.int32, (1, 2), 1).astype(jnp.float32) - 1.0
    xv = x * signs  # [[-x, x]]
    # Stable log_sigmoid(z) = min(z, 0) - log(1 + exp(-|z|))
    out_ref[...] = jnp.minimum(xv, 0.0) - jnp.log(1.0 + jnp.exp(-jnp.abs(xv)))


def minimal_forward(param_scalar):
    """param_scalar: scalar f32. Returns shape (2,) f32: [log(1-p), log(p)]."""
    param = jnp.asarray(param_scalar, dtype=jnp.float32).reshape(1)
    out = pl.pallas_call(
        _minimal_kernel,
        out_shape=jax.ShapeDtypeStruct((1, 2), jnp.float32),
        in_specs=[pl.BlockSpec(memory_space=pltpu.MemorySpace.SMEM)],
        out_specs=pl.BlockSpec(memory_space=pltpu.MemorySpace.VMEM),
        cost_estimate=pl.CostEstimate(
            flops=8, transcendentals=2, bytes_accessed=16
        ),
    )(param)
    return out.reshape(2)


if __name__ == "__main__":
    # Deterministic "parameter init": PyTorch initializes param to 0.0.
    # Perturb it deterministically with PRNGKey(0) so the test is non-trivial.
    key = jax.random.PRNGKey(0)
    param = jnp.float32(0.0) + jax.random.normal(key, (), dtype=jnp.float32) * 0.1

    result = minimal_forward(param)
    jax.block_until_ready(result)

    # Reference check in plain JAX (same math as the PyTorch module).
    p = jax.nn.sigmoid(param)
    ref = jnp.log(jnp.stack([1.0 - p, p]))
    assert result.shape == (2,), result.shape
    assert jnp.allclose(result, ref, atol=1e-5, rtol=1e-5), (result, ref)

    print("KERNEL_OK")
</pallas_src>

<mosaic_0001>
module attributes {stable_mosaic.version = 11 : i64} {
  func.func @_minimal_kernel(%arg0: memref<1xf32, #tpu.memory_space<smem>>, %arg1: memref<1x2xf32, #tpu.memory_space<vmem>>) attributes {dimension_semantics = [], scalar_prefetch = 0 : i64, scratch_operands = 0 : i64, tpu.core_type = #tpu.core_type<tc>} {
    %c0 = arith.constant 0 : index
    %0 = memref.load %arg0[%c0] : memref<1xf32, #tpu.memory_space<smem>>
    %1 = tpu.iota {dimensions = array<i32: 1>} : vector<1x2xi32>
    %2 = arith.sitofp %1 : vector<1x2xi32> to vector<1x2xf32>
    %cst = arith.constant 2.000000e+00 : f32
    %3 = vector.broadcast %cst : f32 to vector<1x2xf32>
    %4 = arith.mulf %3, %2 : vector<1x2xf32>
    %cst_0 = arith.constant 1.000000e+00 : f32
    %5 = vector.broadcast %cst_0 : f32 to vector<1x2xf32>
    %6 = arith.subf %4, %5 : vector<1x2xf32>
    %7 = vector.broadcast %0 : f32 to vector<1x2xf32>
    %8 = arith.mulf %7, %6 : vector<1x2xf32>
    %cst_1 = arith.constant 0.000000e+00 : f32
    %9 = vector.broadcast %cst_1 : f32 to vector<1x2xf32>
    %10 = arith.minimumf %8, %9 : vector<1x2xf32>
    %11 = math.absf %8 : vector<1x2xf32>
    %cst_2 = arith.constant 0.000000e+00 : f32
    %12 = vector.broadcast %cst_2 : f32 to vector<1x2xf32>
    %13 = arith.subf %12, %11 : vector<1x2xf32>
    %14 = math.exp %13 : vector<1x2xf32>
    %cst_3 = arith.constant 1.000000e+00 : f32
    %15 = vector.broadcast %cst_3 : f32 to vector<1x2xf32>
    %16 = arith.addf %15, %14 : vector<1x2xf32>
    %17 = math.log %16 : vector<1x2xf32>
    %18 = arith.subf %10, %17 : vector<1x2xf32>
    %c0_4 = arith.constant 0 : index
    %c0_5 = arith.constant 0 : index
    %19 = vector.load %arg1[%c0_4, %c0_5] : memref<1x2xf32, #tpu.memory_space<vmem>>, vector<1x2xf32>
    tpu.vector_store %arg1[%c0_4, %c0_5], %18 {strides = array<i32>} : memref<1x2xf32, #tpu.memory_space<vmem>>, vector<1x2xf32>,
    return
  }
}

</mosaic_0001>

<llo_original>
// kernel: tpu_custom_call.1
$region0: #{tpu_custom_call.1}
  #allocation0 [shape = 'u32[]', space=smem, size = 0x4, offset = 0x4, fixed_abs, tag = 'smem constant byte address 0x4 - core index']
  #allocation1 [shape = 'u32[144,128]{1,0:T(1,128)}', space=vmem, size = 0x12000, scoped, tag = 'internal scratch']
  #allocation2 [shape = 'f32[1]{0:T(128)S(6)}', space=smem, size = 0x200, scoped, tag = 'scoped memory for tpu_custom_call.1']
  %s0 = inlined_call_operand.<no memory space> [shape: f32[1], index: 0, kind: input, shape index: {}]
  %s1 = inlined_call_operand.hbm [shape: f32[1,2], index: 1, kind: output, shape index: {}]
  %s2 = sld [smem:[#allocation0]]
  $region14: #{tpu_custom_call.1} parent=0
    _
  %s4 = ssub.s32 1, %s2
  %s5 = scalar_select 0, %s4, %s2
  %6 = sst [smem:[#allocation2]] %s0
  $region1: #{tpu_custom_call.1} parent=0
    #allocation3 [shape = 'u8[512]{0}', space=vmem, size = 0x400, scoped, tag = 'output window, operand 0, single buffered']
    #allocation4 [shape = 's32[1]{0}', space=sflag, size = 0x4, scoped, tag = 'scoped memory for tpu_custom_call.1']
    %7 = vsyncpa [#allocation4], 0
    // Predicated region
    $region2: #{tpu_custom_call.1} parent=1 // pred_check
      _
    $region3: #{tpu_custom_call.1} parent=1 // pred_check_branch
      %9 = sbr.rel (0) target = $region5
    $region4: #{tpu_custom_call.1} parent=1 // pred_region
      _
    $region5: #{tpu_custom_call.1} parent=1 // pred_fallthru
      _
    %s10 = sld [smem:[#allocation2]]
    %v11 = vlaneseq
    %v12 = vand.u32 %v11, 127
    %v13 = vcvt.s32.f32 %v12
    %v14 = vmul.f32 %v13, 2.0
    %v15 = vsub.f32 %v14, 1.0
    %v16 = vstv %s10
    %v17 = vmul.f32 %v16, %v15
    %v18 = vmin.f32 %v17, 0.0
    %v19 = vand.u32 2147483647, %v17
    %v20 = vsub.f32 0.0, %v19
    %v21 = vmul.f32 %v20, 1.442695
    %v22 = vpow.pop %v21
    %v23 = vadd.f32 %v22, 1.0
    %v24 = vlog2.pop %v23
    %v25 = vmul.f32 %v24, 0.6931472
    %v26 = vsub.f32 %v18, %v25
    %vm27 = vcmask 8192
    %28 = vst.msk [vmem:[#allocation3] sm:$0x1] %vm27, %v26
    // Predicated region
    $region6: #{tpu_custom_call.1} parent=1 // pred_check
      _
    $region7: #{tpu_custom_call.1} parent=1 // pred_check_branch
      %30 = sbr.rel (0) target = $region9
    $region8: #{tpu_custom_call.1} parent=1 // pred_region
      %s32 = ssub.s32 16, 16
      %33 = vsyncadd [#allocation4], %s32
      %s35 = sshll.u32 [#allocation3], 4
      %s36 = int_to_ptr.vmem [resolvable:$true] %s35
      %38 = dma.vmem_to_hbm [thread:$0]  %s36, 16, %s1, [#allocation4]
    $region9: #{tpu_custom_call.1} parent=1 // pred_fallthru
      _
    // Predicated region
    $region10: #{tpu_custom_call.1} parent=1 // pred_check
      _
    $region11: #{tpu_custom_call.1} parent=1 // pred_check_branch
      %40 = sbr.rel (0) target = $region13
    $region12: #{tpu_custom_call.1} parent=1 // pred_region
      %41 = dma.done [#allocation4], 16
    $region13: #{tpu_custom_call.1} parent=1 // pred_fallthru
      _
    %42 = vsyncpa [#allocation4], 1

</llo_original>
